<compile_context>
chip_gen: v5e
topology: v5e:2x2
jax: 0.10.0
libtpu: 0.0.40
codegen_flags: <defaults>
</compile_context>

<pallas_src>
import jax
import jax.numpy as jnp
from jax.experimental import pallas as pl
from jax.experimental.pallas import tpu as pltpu


def generate_encoder(in_channels: int, max_len: int) -> jnp.ndarray:
    """Sinusoidal PE table, identical to PositionEncoder1D.generate_encoder."""
    pos = jnp.arange(max_len, dtype=jnp.float32)[:, None]           # (max_len, 1)
    i = jnp.arange(in_channels, dtype=jnp.float32)[None, :]         # (1, C)
    angle_rates = 1.0 / jnp.power(10000.0, 2.0 * jnp.floor(i / 2.0) / in_channels)
    pe = pos * angle_rates                                           # (max_len, C)
    pe = pe.at[:, 0::2].set(jnp.sin(pe[:, 0::2]))
    pe = pe.at[:, 1::2].set(jnp.cos(pe[:, 1::2]))
    return pe


def _add_pe_kernel(x_ref, pe_ref, o_ref):
    # Upcast to f32, add once, downcast once to the output dtype.
    # Broadcasting covers every block pairing used below:
    #   (B, TL)      + (1, TL)
    #   (B, TT, C)   + (TT, C) / (1, C)
    #   (1, TT, C)   + (TT, C) / (1, C)
    o_ref[...] = (x_ref[...].astype(jnp.float32)
                  + pe_ref[...].astype(jnp.float32)).astype(o_ref.dtype)


def _round_down(x: int, m: int) -> int:
    return (x // m) * m


def _round_up(x: int, m: int) -> int:
    return ((x + m - 1) // m) * m


# Double-buffered x + out + pe target (≈4 MiB-class x tiles).  Fits every
# generation; vmem_limit leaves 16 MiB headroom under v7x's 64 MiB physical.
_WIDE_VMEM_BUDGET = 24 * 1024 * 1024
_VMEM_LIMIT_BYTES = 48 * 1024 * 1024


def position_encoder_1d(x: jnp.ndarray, pe_table: jnp.ndarray, point: int = -1,
                        *, vmem_budget_bytes: int = _WIDE_VMEM_BUDGET):
    """Forward pass of PositionEncoder1D (inference mode: dropout == identity)."""
    B, T, C = x.shape
    dtype = x.dtype
    itemsize = jnp.dtype(dtype).itemsize
    # Keep PE in f32 (kernel adds in f32, single downcast) — matches reference.
    pe_table = pe_table.astype(jnp.float32)
    # dtype-aware sublane tile: 8 rows (f32), 16 (bf16), 32 (int8/fp8)
    sub = max(8, 32 // itemsize)

    params_1d = pltpu.CompilerParams(dimension_semantics=("parallel",),
                                     vmem_limit_bytes=_VMEM_LIMIT_BYTES)

    if C < 128:
        # ---- lane-dense flattened path (narrow channels) -------------------
        L = T * C
        if point == -1:
            pe_full = pe_table[:T, :]                               # (T, C)
        else:
            pe_full = jnp.broadcast_to(pe_table[point, :], (T, C))  # (T, C)
        x2 = x.reshape(B, L)
        pe2 = pe_full.reshape(1, L)

        # Size TL against the *padded* sublane footprint (B < 8 pads up).
        pad_b = _round_up(B, sub)
        per_lane = 2 * pad_b * itemsize + 8 * 4      # x + out (padded) + pe (f32)
        target = max(128, vmem_budget_bytes // (2 * per_lane))
        if L <= target or L <= 128:
            TL = L                                   # full axis (always legal)
        else:
            TL = max(128, _round_down(min(target, L), 128))
        grid = (pl.cdiv(L, TL),)

        cost = pl.CostEstimate(flops=B * L, transcendentals=0,
                               bytes_accessed=2 * B * L * itemsize + L * 4)

        out2 = pl.pallas_call(
            _add_pe_kernel,
            out_shape=jax.ShapeDtypeStruct((B, L), dtype),
            grid=grid,
            in_specs=[
                pl.BlockSpec((B, TL), lambda l: (0, l)),
                pl.BlockSpec((1, TL), lambda l: (0, l)),
            ],
            out_specs=pl.BlockSpec((B, TL), lambda l: (0, l)),
            compiler_params=params_1d,
            cost_estimate=cost,
        )(x2, pe2)
        return out2.reshape(B, T, C)

    # ---- wide-channel path (C >= 128, the common SATRN case) ---------------
    x_row = C * itemsize                 # bytes per sequence row of x / out
    pe_row = C * 4 if point == -1 else 0  # (1, C) PE stays resident -> ~free
    if point == -1:
        pe = pe_table[:T, :]                                        # (T, C)
    else:
        pe = pe_table[point:point + 1, :]                           # (1, C)

    cost = pl.CostEstimate(
        flops=B * T * C, transcendentals=0,
        bytes_accessed=2 * B * T * C * itemsize + pe.size * 4)

    # (1) Batch-folded blocks: (B, TT, C), grid over t only.  PE fetched
    #     exactly once; step count is ceil(T/TT) instead of B*ceil(T/TT).
    folded_per_row = 2 * B * x_row + pe_row
    tt_folded = vmem_budget_bytes // (2 * folded_per_row)
    if tt_folded >= T or tt_folded >= sub:
        TT = T if tt_folded >= T else _round_down(tt_folded, sub)
        grid = (pl.cdiv(T, TT),)
        x_spec = pl.BlockSpec((B, TT, C), lambda t: (0, t, 0))
        if point == -1:
            pe_spec = pl.BlockSpec((TT, C), lambda t: (t, 0))
        else:
            pe_spec = pl.BlockSpec((1, C), lambda t: (0, 0))
        return pl.pallas_call(
            _add_pe_kernel,
            out_shape=jax.ShapeDtypeStruct((B, T, C), dtype),
            grid=grid,
            in_specs=[x_spec, pe_spec],
            out_specs=x_spec,
            compiler_params=params_1d,
            cost_estimate=cost,
        )(x, pe)

    # (2) Per-batch tiles.  t is the OUTER grid axis so the PE block index is
    #     constant across the inner b loop and is never re-DMA'd per batch.
    per_row = 2 * x_row + pe_row
    tt = vmem_budget_bytes // (2 * per_row)
    if tt >= T or T <= sub:
        TT = T
    else:
        TT = max(sub, _round_down(tt, sub))
    NT = pl.cdiv(T, TT)

    if NT == 1:
        # Whole sequence fits per batch: b is the (only) leading parallel axis
        # so both v7x TensorCores get work; PE block index constant -> resident.
        grid = (B,)
        x_spec = pl.BlockSpec((1, T, C), lambda b: (b, 0, 0))
        pe_spec = (pl.BlockSpec((T, C), lambda b: (0, 0)) if point == -1
                   else pl.BlockSpec((1, C), lambda b: (0, 0)))
        dims = ("parallel",)
    else:
        grid = (NT, B)                   # t outer, b inner
        x_spec = pl.BlockSpec((1, TT, C), lambda t, b: (b, t, 0))
        pe_spec = (pl.BlockSpec((TT, C), lambda t, b: (t, 0)) if point == -1
                   else pl.BlockSpec((1, C), lambda t, b: (0, 0)))
        dims = ("parallel", "parallel")

    return pl.pallas_call(
        _add_pe_kernel,
        out_shape=jax.ShapeDtypeStruct((B, T, C), dtype),
        grid=grid,
        in_specs=[x_spec, pe_spec],
        out_specs=x_spec,
        compiler_params=pltpu.CompilerParams(
            dimension_semantics=dims, vmem_limit_bytes=_VMEM_LIMIT_BYTES),
        cost_estimate=cost,
    )(x, pe)


if __name__ == "__main__":
    MAX_LEN = 500
    key = jax.random.PRNGKey(0)

    # --- narrow-channel (lane-dense flattened) path: C < 128 ----------------
    B, T, C = 2, 8, 32
    x = jax.random.normal(key, (B, T, C), dtype=jnp.float32)
    pe_table = generate_encoder(C, MAX_LEN)
    ref = x + pe_table[None, :T, :]

    out = jax.block_until_ready(position_encoder_1d(x, pe_table, point=-1))
    assert out.shape == x.shape and out.dtype == x.dtype
    assert jnp.allclose(out, ref, atol=1e-6, rtol=1e-6)

    point = 3
    out_p = jax.block_until_ready(position_encoder_1d(x, pe_table, point=point))
    ref_p = x + pe_table[point][None, None, :]
    assert jnp.allclose(out_p, ref_p, atol=1e-6, rtol=1e-6)

    # forced small budget -> exercises the tiled narrow path (TL < L)
    out_t = jax.block_until_ready(
        position_encoder_1d(x, pe_table, point=-1, vmem_budget_bytes=4096))
    assert jnp.allclose(out_t, ref, atol=1e-6, rtol=1e-6)

    # --- wide-channel path: C >= 128 -----------------------------------------
    B2, T2, C2 = 2, 16, 128
    x2 = jax.random.normal(jax.random.PRNGKey(0), (B2, T2, C2), dtype=jnp.float32)
    pe_table2 = generate_encoder(C2, MAX_LEN)
    ref2 = x2 + pe_table2[None, :T2, :]
    ref2p = x2 + pe_table2[5][None, None, :]

    out2 = jax.block_until_ready(position_encoder_1d(x2, pe_table2, point=-1))
    assert jnp.allclose(out2, ref2, atol=1e-6, rtol=1e-6)

    out2p = jax.block_until_ready(position_encoder_1d(x2, pe_table2, point=5))
    assert jnp.allclose(out2p, ref2p, atol=1e-6, rtol=1e-6)

    # forced budgets -> exercise the batch-folded multi-step grid and the
    # per-batch (t outer, b inner) tiled grid
    out2f = jax.block_until_ready(
        position_encoder_1d(x2, pe_table2, point=-1, vmem_budget_bytes=65536))
    assert jnp.allclose(out2f, ref2, atol=1e-6, rtol=1e-6)

    out2t = jax.block_until_ready(
        position_encoder_1d(x2, pe_table2, point=-1, vmem_budget_bytes=4096))
    assert jnp.allclose(out2t, ref2, atol=1e-6, rtol=1e-6)

    out2tp = jax.block_until_ready(
        position_encoder_1d(x2, pe_table2, point=5, vmem_budget_bytes=4096))
    assert jnp.allclose(out2tp, ref2p, atol=1e-6, rtol=1e-6)

    # --- bf16 activations: PE kept f32, add in f32, single downcast ----------
    x_bf = x2.astype(jnp.bfloat16)
    out_bf = jax.block_until_ready(position_encoder_1d(x_bf, pe_table2, point=-1))
    ref_bf = (x_bf.astype(jnp.float32) + pe_table2[None, :T2, :]).astype(jnp.bfloat16)
    assert out_bf.dtype == jnp.bfloat16
    assert jnp.allclose(out_bf.astype(jnp.float32), ref_bf.astype(jnp.float32),
                        atol=1e-6, rtol=1e-6)

    print("KERNEL_OK")
</pallas_src>

<mosaic_0001>
module attributes {stable_mosaic.version = 11 : i64} {
  func.func @_add_pe_kernel(%arg0: i32, %arg1: memref<2x256xf32, #tpu.memory_space<vmem>>, %arg2: memref<1x256xf32, #tpu.memory_space<vmem>>, %arg3: memref<2x256xf32, #tpu.memory_space<vmem>>) attributes {dimension_semantics = [#tpu.dimension_semantics<parallel>], iteration_bounds = array<i64: 1>, scalar_prefetch = 0 : i64, scratch_operands = 0 : i64, tpu.core_type = #tpu.core_type<tc>, window_params = [{transform_indices = @transform_0, window_bounds = array<i64: 2, 256>}, {transform_indices = @transform_1, window_bounds = array<i64: 1, 256>}, {transform_indices = @transform_2, window_bounds = array<i64: 2, 256>}]} {
    %c0 = arith.constant 0 : index
    %c0_0 = arith.constant 0 : index
    %0 = vector.load %arg1[%c0, %c0_0] : memref<2x256xf32, #tpu.memory_space<vmem>>, vector<2x256xf32>
    %c0_1 = arith.constant 0 : index
    %c0_2 = arith.constant 0 : index
    %1 = vector.load %arg2[%c0_1, %c0_2] : memref<1x256xf32, #tpu.memory_space<vmem>>, vector<1x256xf32>
    %2 = vector.broadcast %1 : vector<1x256xf32> to vector<2x256xf32>
    %3 = arith.addf %0, %2 : vector<2x256xf32>
    %c0_3 = arith.constant 0 : index
    %c0_4 = arith.constant 0 : index
    %4 = vector.load %arg3[%c0_3, %c0_4] : memref<2x256xf32, #tpu.memory_space<vmem>>, vector<2x256xf32>
    tpu.vector_store %arg3[%c0_3, %c0_4], %3 {strides = array<i32>} : memref<2x256xf32, #tpu.memory_space<vmem>>, vector<2x256xf32>,
    return
  }
  func.func @transform_0(%arg0: i32) -> (i32, i32) {
    %c0_i32 = arith.constant 0 : i32
    %c0_i32_0 = arith.constant 0 : i32
    return %c0_i32, %arg0 : i32, i32
  }
  func.func @transform_1(%arg0: i32) -> (i32, i32) {
    %c0_i32 = arith.constant 0 : i32
    %c0_i32_0 = arith.constant 0 : i32
    return %c0_i32, %arg0 : i32, i32
  }
  func.func @transform_2(%arg0: i32) -> (i32, i32) {
    %c0_i32 = arith.constant 0 : i32
    %c0_i32_0 = arith.constant 0 : i32
    return %c0_i32, %arg0 : i32, i32
  }
}

</mosaic_0001>

<llo_original>
// kernel: tpu_custom_call.1
$region0: #{tpu_custom_call.1}
  #allocation0 [shape = 'u32[]', space=smem, size = 0x4, offset = 0x4, fixed_abs, tag = 'smem constant byte address 0x4 - core index']
  #allocation1 [shape = 'u32[72,128]{1,0:T(1,128)}', space=vmem, size = 0x9000, scoped, tag = 'internal scratch']
  %s0 = inlined_call_operand.hbm [shape: f32[2,256], index: 0, kind: input, shape index: {}]
  %s1 = inlined_call_operand.hbm [shape: f32[1,256], index: 1, kind: input, shape index: {}]
  %s2 = inlined_call_operand.hbm [shape: f32[2,256], index: 2, kind: output, shape index: {}]
  %s3 = sld [smem:[#allocation0]]
  $region26: #{tpu_custom_call.1} parent=0
    _
  %s5 = ssub.s32 1, %s3
  %s6 = scalar_select 0, %s5, %s3
  $region1: #{tpu_custom_call.1} parent=0
    #allocation2 [shape = 'u8[2048]{0}', space=vmem, size = 0x800, scoped, tag = 'input window, operand 0, single buffered']
    #allocation3 [shape = 's32[1]{0}', space=sflag, size = 0x4, scoped, tag = 'scoped memory for tpu_custom_call.1']
    #allocation4 [shape = 's32[1]{0}', space=sflag, size = 0x4, scoped, tag = 'scoped memory for tpu_custom_call.1']
    #allocation5 [shape = 'u8[1024]{0}', space=vmem, size = 0x400, scoped, tag = 'input window, operand 1, single buffered']
    #allocation6 [shape = 's32[1]{0}', space=sflag, size = 0x4, scoped, tag = 'scoped memory for tpu_custom_call.1']
    #allocation7 [shape = 'u8[2048]{0}', space=vmem, size = 0x800, scoped, tag = 'output window, operand 0, single buffered']
    %7 = vsyncpa [#allocation3], 0
    %8 = vsyncpa [#allocation6], 0
    %9 = vsyncpa [#allocation4], 0
    // Predicated region
    $region2: #{tpu_custom_call.1} parent=1 // pred_check
      _
    $region3: #{tpu_custom_call.1} parent=1 // pred_check_branch
      %11 = sbr.rel (0) target = $region5
    $region4: #{tpu_custom_call.1} parent=1 // pred_region
      %13 = vsyncadd [#allocation3], 0
      %s15 = sshll.u32 %s0, 4
      %s16 = int_to_ptr.hbm [resolvable:$true] %s15
      %s17 = sshll.u32 [#allocation2], 4
      %s18 = int_to_ptr.vmem [resolvable:$true] %s17
      %20 = dma.hbm_to_vmem [thread:$0]  %s16, 64, %s18, [#allocation3]
    $region5: #{tpu_custom_call.1} parent=1 // pred_fallthru
      _
    // Predicated region
    $region6: #{tpu_custom_call.1} parent=1 // pred_check
      _
    $region7: #{tpu_custom_call.1} parent=1 // pred_check_branch
      %22 = sbr.rel (0) target = $region9
    $region8: #{tpu_custom_call.1} parent=1 // pred_region
      %24 = vsyncadd [#allocation6], 0
      %s26 = sshll.u32 %s1, 4
      %s27 = int_to_ptr.hbm [resolvable:$true] %s26
      %s28 = sshll.u32 [#allocation5], 4
      %s29 = int_to_ptr.vmem [resolvable:$true] %s28
      %31 = dma.hbm_to_vmem [thread:$0]  %s27, 32, %s29, [#allocation6]
    $region9: #{tpu_custom_call.1} parent=1 // pred_fallthru
      _
    // Predicated region
    $region10: #{tpu_custom_call.1} parent=1 // pred_check
      _
    $region11: #{tpu_custom_call.1} parent=1 // pred_check_branch
      %33 = sbr.rel (0) target = $region13
    $region12: #{tpu_custom_call.1} parent=1 // pred_region
      %35 = dma.done [#allocation3], 64
    $region13: #{tpu_custom_call.1} parent=1 // pred_fallthru
      _
    // Predicated region
    $region14: #{tpu_custom_call.1} parent=1 // pred_check
      _
    $region15: #{tpu_custom_call.1} parent=1 // pred_check_branch
      %37 = sbr.rel (0) target = $region17
    $region16: #{tpu_custom_call.1} parent=1 // pred_region
      %39 = dma.done [#allocation6], 32
    $region17: #{tpu_custom_call.1} parent=1 // pred_fallthru
      _
    %v40 = vld [vmem:[#allocation2] sm:$0xf]
    %v41 = vld [vmem:[#allocation5] sm:$0x3]
    %v43 = vperm.slane %v41, 0
    %v44 = vperm.slane %v41, 1
    %v45 = vrot.slane %v44, 6
    %vm46 = vcmask 1041408
    %v47 = vsel %vm46, %v43, %v45
    %v49 = vadd.f32 %v40, %v47
    %50 = vst [vmem:[#allocation7] sm:$0xf] %v49
    // Predicated region
    $region18: #{tpu_custom_call.1} parent=1 // pred_check
      _
    $region19: #{tpu_custom_call.1} parent=1 // pred_check_branch
      %52 = sbr.rel (0) target = $region21
    $region20: #{tpu_custom_call.1} parent=1 // pred_region
      %54 = vsyncadd [#allocation4], 0
      %s56 = sshll.u32 [#allocation7], 4
      %s57 = int_to_ptr.vmem [resolvable:$true] %s56
      %s58 = sshll.u32 %s2, 4
      %s59 = int_to_ptr.hbm [resolvable:$true] %s58
      %61 = dma.vmem_to_hbm [thread:$0]  %s57, 64, %s59, [#allocation4]
    $region21: #{tpu_custom_call.1} parent=1 // pred_fallthru
      _
    // Predicated region
    $region22: #{tpu_custom_call.1} parent=1 // pred_check
      _
    $region23: #{tpu_custom_call.1} parent=1 // pred_check_branch
      %63 = sbr.rel (0) target = $region25
    $region24: #{tpu_custom_call.1} parent=1 // pred_region
      %65 = dma.done [#allocation4], 64
    $region25: #{tpu_custom_call.1} parent=1 // pred_fallthru
      _
    %66 = vsyncpa [#allocation3], 1
    %67 = vsyncpa [#allocation6], 1
    %68 = vsyncpa [#allocation4], 1

</llo_original>
